<compile_context>
chip_gen: v6e
topology: v6e:2x2x1
jax: 0.10.0
libtpu: 0.0.40
codegen_flags: <defaults>
</compile_context>

<pallas_src>
import jax
import jax.numpy as jnp
from jax import lax
from jax.experimental import pallas as pl
from jax.experimental.pallas import tpu as pltpu

_LANE = 128
_MAX_TB = 4096  # 4 rows * 4096 cols * 4 B = 64 KiB per x buffer -> trivial VMEM


def _lqr_kernel(a_ref, b_ref, r_ref, theta_ref, x_ref, o_ref, k_ref):
    # ---- one-time gain computation (first grid step only) -------------------
    @pl.when(pl.program_id(0) == 0)
    def _compute_gain():
        A = a_ref[...]        # (n, n)
        B = b_ref[...]        # (n, m)
        R = r_ref[...]        # (m, m)
        th = theta_ref[...]   # (n, n)

        # theta^T @ theta  (contract leading axes -> no explicit transpose)
        TtT = lax.dot_general(th, th, (((0,), (0,)), ((), ())),
                              preferred_element_type=jnp.float32)       # (n, n)
        # B^T @ (theta^T theta)
        G = lax.dot_general(B, TtT, (((0,), (0,)), ((), ())),
                            preferred_element_type=jnp.float32)         # (m, n)
        inner = R + jnp.dot(G, B, preferred_element_type=jnp.float32)   # (2, 2)
        M = jnp.dot(G, A, preferred_element_type=jnp.float32)           # (2, n)

        # Closed-form 2x2 solve:  K = -inner^{-1} @ M,
        # inner^{-1} = (1/det) * [[d, -b], [-c, a]].
        a = inner[0:1, 0:1]
        b = inner[0:1, 1:2]
        c = inner[1:2, 0:1]
        d = inner[1:2, 1:2]
        # inner is SPD (R SPD + Gram term) so det > 0; no clamping applied
        # (matches torch .inverse() semantics for a singular matrix).
        inv_det = 1.0 / (a * d - b * c)                                  # (1, 1)

        M0 = M[0:1, :]
        M1 = M[1:2, :]
        K0 = (b * M1 - d * M0) * inv_det                                 # (1, n)
        K1 = (c * M0 - a * M1) * inv_det                                 # (1, n)
        k_ref[...] = jnp.concatenate([K0, K1], axis=0)                   # (m, n)

    # ---- per-tile: stream x, emit K @ x -------------------------------------
    o_ref[...] = jnp.dot(k_ref[...], x_ref[...],
                         preferred_element_type=jnp.float32)


def lqr_forward(A, B, R, theta, x):
    n = A.shape[0]
    m = B.shape[1]
    assert m == 2, "closed-form solve specialized for input_n == 2"
    batch = x.shape[1]

    # Lane-dense batch tiling: pad batch to a multiple of 128 and pick the
    # largest tile (<= _MAX_TB) so stores are full-vreg and DMA is pipelined.
    padded = _LANE * pl.cdiv(batch, _LANE)
    tb = min(_MAX_TB, padded)
    padded = tb * pl.cdiv(padded, tb)
    if padded != batch:
        x = jnp.pad(x, ((0, 0), (0, padded - batch)))
    grid = (padded // tb,)

    full = lambda i: (0, 0)  # system matrices: same block every step (no re-DMA)

    out = pl.pallas_call(
        _lqr_kernel,
        out_shape=jax.ShapeDtypeStruct((m, padded), jnp.float32),
        grid_spec=pltpu.PrefetchScalarGridSpec(
            num_scalar_prefetch=0,
            grid=grid,
            in_specs=[
                pl.BlockSpec((n, n), full),                 # A
                pl.BlockSpec((n, m), full),                 # B
                pl.BlockSpec((m, m), full),                 # R
                pl.BlockSpec((n, n), full),                 # theta
                pl.BlockSpec((n, tb), lambda i: (0, i)),    # x  (batch-tiled)
            ],
            out_specs=pl.BlockSpec((m, tb), lambda i: (0, i)),
            scratch_shapes=[pltpu.VMEM((m, n), jnp.float32)],  # persistent K
        ),
        # "arbitrary": K scratch is written at step 0 and reused by later
        # (sequential) steps on the same core; do not shard across cores.
        compiler_params=pltpu.CompilerParams(
            dimension_semantics=("arbitrary",)),
        cost_estimate=pl.CostEstimate(
            flops=2 * m * n * padded + 4 * n * n * n,
            transcendentals=0,
            bytes_accessed=4 * (n * padded + m * padded + 2 * n * n
                                + n * m + m * m),
        ),
    )(A, B, R, theta, x)
    return out[:, :batch]


def lqr_forward_ref(A, B, R, theta, x):
    inner = R + B.T @ theta.T @ theta @ B
    K = -jnp.linalg.inv(inner) @ B.T @ theta.T @ theta @ A
    return K @ x


if __name__ == "__main__":
    n, m, batch = 4, 2, 8  # state_n=4 (init_theta indexes row/col 3), input_n=2

    key = jax.random.PRNGKey(0)
    kA, kB, kX = jax.random.split(key, 3)
    A = jax.random.normal(kA, (n, n), dtype=jnp.float32)
    B = jax.random.normal(kB, (n, m), dtype=jnp.float32)
    R = jnp.eye(m, dtype=jnp.float32)  # SPD cost on inputs

    # Mirrors LQRModel.__init__ init_theta.
    theta = jnp.eye(n, dtype=jnp.float32)
    theta = theta.at[0, 2].set(0.5)
    theta = theta.at[3, 2].set(2.5)
    theta = theta.at[1, 0].set(8.0)

    x = jax.random.normal(kX, (n, batch), dtype=jnp.float32)

    out = jax.block_until_ready(lqr_forward(A, B, R, theta, x))
    ref = lqr_forward_ref(A, B, R, theta, x)

    assert out.shape == (m, batch)
    assert jnp.allclose(out, ref, atol=1e-4, rtol=1e-4), (out, ref)
    print("KERNEL_OK")
</pallas_src>

<mosaic_0001>
module attributes {stable_mosaic.version = 11 : i64} {
  func.func @_lqr_kernel(%arg0: i32, %arg1: memref<4x4xf32, #tpu.memory_space<vmem>>, %arg2: memref<4x2xf32, #tpu.memory_space<vmem>>, %arg3: memref<2x2xf32, #tpu.memory_space<vmem>>, %arg4: memref<4x4xf32, #tpu.memory_space<vmem>>, %arg5: memref<4x128xf32, #tpu.memory_space<vmem>>, %arg6: memref<2x128xf32, #tpu.memory_space<vmem>>, %arg7: memref<2x4xf32, #tpu.memory_space<vmem>>) attributes {dimension_semantics = [#tpu.dimension_semantics<arbitrary>], iteration_bounds = array<i64: 1>, scalar_prefetch = 0 : i64, scratch_operands = 1 : i64, tpu.core_type = #tpu.core_type<tc>, window_params = [{pipeline_mode = #tpu.pipeline_mode<synchronous>, transform_indices = @transform_0, window_bounds = array<i64: 4, 4>}, {pipeline_mode = #tpu.pipeline_mode<synchronous>, transform_indices = @transform_1, window_bounds = array<i64: 4, 2>}, {pipeline_mode = #tpu.pipeline_mode<synchronous>, transform_indices = @transform_2, window_bounds = array<i64: 2, 2>}, {pipeline_mode = #tpu.pipeline_mode<synchronous>, transform_indices = @transform_3, window_bounds = array<i64: 4, 4>}, {transform_indices = @transform_4, window_bounds = array<i64: 4, 128>}, {transform_indices = @transform_5, window_bounds = array<i64: 2, 128>}]} {
    %c0_i32 = arith.constant 0 : i32
    %0 = arith.cmpi eq, %arg0, %c0_i32 : i32
    %1 = arith.extui %0 : i1 to i32
    %c0_i32_0 = arith.constant 0 : i32
    %2 = arith.cmpi ne, %1, %c0_i32_0 : i32
    scf.if %2 {
      %c0_6 = arith.constant 0 : index
      %c0_7 = arith.constant 0 : index
      %7 = vector.load %arg1[%c0_6, %c0_7] : memref<4x4xf32, #tpu.memory_space<vmem>>, vector<4x4xf32>
      %c0_8 = arith.constant 0 : index
      %c0_9 = arith.constant 0 : index
      %8 = vector.load %arg2[%c0_8, %c0_9] : memref<4x2xf32, #tpu.memory_space<vmem>>, vector<4x2xf32>
      %c0_10 = arith.constant 0 : index
      %c0_11 = arith.constant 0 : index
      %9 = vector.load %arg3[%c0_10, %c0_11] : memref<2x2xf32, #tpu.memory_space<vmem>>, vector<2x2xf32>
      %c0_12 = arith.constant 0 : index
      %c0_13 = arith.constant 0 : index
      %10 = vector.load %arg4[%c0_12, %c0_13] : memref<4x4xf32, #tpu.memory_space<vmem>>, vector<4x4xf32>
      %cst_14 = arith.constant dense<0.000000e+00> : vector<4x4xf32>
      %11 = tpu.matmul %10, %10, %cst_14 {dimension_numbers = #tpu.dot_dimension_numbers<[0], [0], [1], [1], [0, 1, 1, 1], [], []>} : vector<4x4xf32>, vector<4x4xf32>, vector<4x4xf32> -> vector<4x4xf32>
      %cst_15 = arith.constant dense<0.000000e+00> : vector<2x4xf32>
      %12 = tpu.matmul %8, %11, %cst_15 {dimension_numbers = #tpu.dot_dimension_numbers<[0], [0], [1], [1], [0, 1, 1, 1], [], []>} : vector<4x2xf32>, vector<4x4xf32>, vector<2x4xf32> -> vector<2x4xf32>
      %cst_16 = arith.constant dense<0.000000e+00> : vector<2x2xf32>
      %13 = tpu.matmul %12, %8, %cst_16 {dimension_numbers = #tpu.dot_dimension_numbers<[1], [0], [0], [1], [0, 0, 1, 1], [], []>} : vector<2x4xf32>, vector<4x2xf32>, vector<2x2xf32> -> vector<2x2xf32>
      %14 = arith.addf %9, %13 : vector<2x2xf32>
      %cst_17 = arith.constant dense<0.000000e+00> : vector<2x4xf32>
      %15 = tpu.matmul %12, %7, %cst_17 {dimension_numbers = #tpu.dot_dimension_numbers<[1], [0], [0], [1], [0, 0, 1, 1], [], []>} : vector<2x4xf32>, vector<4x4xf32>, vector<2x4xf32> -> vector<2x4xf32>
      %16 = vector.extract_strided_slice %14 {offsets = [0, 0], sizes = [1, 1], strides = [1, 1]} : vector<2x2xf32> to vector<1x1xf32>
      %17 = vector.extract_strided_slice %14 {offsets = [0, 1], sizes = [1, 1], strides = [1, 1]} : vector<2x2xf32> to vector<1x1xf32>
      %18 = vector.extract_strided_slice %14 {offsets = [1, 0], sizes = [1, 1], strides = [1, 1]} : vector<2x2xf32> to vector<1x1xf32>
      %19 = vector.extract_strided_slice %14 {offsets = [1, 1], sizes = [1, 1], strides = [1, 1]} : vector<2x2xf32> to vector<1x1xf32>
      %20 = arith.mulf %16, %19 : vector<1x1xf32>
      %21 = arith.mulf %17, %18 : vector<1x1xf32>
      %22 = arith.subf %20, %21 : vector<1x1xf32>
      %cst_18 = arith.constant 1.000000e+00 : f32
      %23 = vector.broadcast %cst_18 : f32 to vector<1x1xf32>
      %24 = arith.divf %23, %22 : vector<1x1xf32>
      %25 = vector.extract_strided_slice %15 {offsets = [0, 0], sizes = [1, 4], strides = [1, 1]} : vector<2x4xf32> to vector<1x4xf32>
      %26 = vector.extract_strided_slice %15 {offsets = [1, 0], sizes = [1, 4], strides = [1, 1]} : vector<2x4xf32> to vector<1x4xf32>
      %27 = vector.broadcast %17 : vector<1x1xf32> to vector<1x4xf32>
      %28 = arith.mulf %27, %26 : vector<1x4xf32>
      %29 = vector.broadcast %19 : vector<1x1xf32> to vector<1x4xf32>
      %30 = arith.mulf %29, %25 : vector<1x4xf32>
      %31 = arith.subf %28, %30 : vector<1x4xf32>
      %32 = vector.broadcast %24 : vector<1x1xf32> to vector<1x4xf32>
      %33 = arith.mulf %31, %32 : vector<1x4xf32>
      %34 = vector.broadcast %18 : vector<1x1xf32> to vector<1x4xf32>
      %35 = arith.mulf %34, %25 : vector<1x4xf32>
      %36 = vector.broadcast %16 : vector<1x1xf32> to vector<1x4xf32>
      %37 = arith.mulf %36, %26 : vector<1x4xf32>
      %38 = arith.subf %35, %37 : vector<1x4xf32>
      %39 = vector.broadcast %24 : vector<1x1xf32> to vector<1x4xf32>
      %40 = arith.mulf %38, %39 : vector<1x4xf32>
      %41 = tpu.concatenate %33, %40 in 0 : vector<1x4xf32>, vector<1x4xf32> -> vector<2x4xf32>
      %c0_19 = arith.constant 0 : index
      %c0_20 = arith.constant 0 : index
      %42 = vector.load %arg7[%c0_19, %c0_20] : memref<2x4xf32, #tpu.memory_space<vmem>>, vector<2x4xf32>
      tpu.vector_store %arg7[%c0_19, %c0_20], %41 {strides = array<i32>} : memref<2x4xf32, #tpu.memory_space<vmem>>, vector<2x4xf32>,
    } else {
    }
    %c0 = arith.constant 0 : index
    %c0_1 = arith.constant 0 : index
    %3 = vector.load %arg7[%c0, %c0_1] : memref<2x4xf32, #tpu.memory_space<vmem>>, vector<2x4xf32>
    %c0_2 = arith.constant 0 : index
    %c0_3 = arith.constant 0 : index
    %4 = vector.load %arg5[%c0_2, %c0_3] : memref<4x128xf32, #tpu.memory_space<vmem>>, vector<4x128xf32>
    %cst = arith.constant dense<0.000000e+00> : vector<2x128xf32>
    %5 = tpu.matmul %3, %4, %cst {dimension_numbers = #tpu.dot_dimension_numbers<[1], [0], [0], [1], [0, 0, 1, 1], [], []>} : vector<2x4xf32>, vector<4x128xf32>, vector<2x128xf32> -> vector<2x128xf32>
    %c0_4 = arith.constant 0 : index
    %c0_5 = arith.constant 0 : index
    %6 = vector.load %arg6[%c0_4, %c0_5] : memref<2x128xf32, #tpu.memory_space<vmem>>, vector<2x128xf32>
    tpu.vector_store %arg6[%c0_4, %c0_5], %5 {strides = array<i32>} : memref<2x128xf32, #tpu.memory_space<vmem>>, vector<2x128xf32>,
    return
  }
  func.func @transform_0(%arg0: i32) -> (i32, i32) {
    %c0_i32 = arith.constant 0 : i32
    %c0_i32_0 = arith.constant 0 : i32
    %c0_i32_1 = arith.constant 0 : i32
    return %c0_i32, %c0_i32_0 : i32, i32
  }
  func.func @transform_1(%arg0: i32) -> (i32, i32) {
    %c0_i32 = arith.constant 0 : i32
    %c0_i32_0 = arith.constant 0 : i32
    %c0_i32_1 = arith.constant 0 : i32
    return %c0_i32, %c0_i32_0 : i32, i32
  }
  func.func @transform_2(%arg0: i32) -> (i32, i32) {
    %c0_i32 = arith.constant 0 : i32
    %c0_i32_0 = arith.constant 0 : i32
    %c0_i32_1 = arith.constant 0 : i32
    return %c0_i32, %c0_i32_0 : i32, i32
  }
  func.func @transform_3(%arg0: i32) -> (i32, i32) {
    %c0_i32 = arith.constant 0 : i32
    %c0_i32_0 = arith.constant 0 : i32
    %c0_i32_1 = arith.constant 0 : i32
    return %c0_i32, %c0_i32_0 : i32, i32
  }
  func.func @transform_4(%arg0: i32) -> (i32, i32) {
    %c0_i32 = arith.constant 0 : i32
    %c0_i32_0 = arith.constant 0 : i32
    return %c0_i32, %arg0 : i32, i32
  }
  func.func @transform_5(%arg0: i32) -> (i32, i32) {
    %c0_i32 = arith.constant 0 : i32
    %c0_i32_0 = arith.constant 0 : i32
    return %c0_i32, %arg0 : i32, i32
  }
}

</mosaic_0001>

<llo_original>
// kernel: tpu_custom_call.1
$region0: #{tpu_custom_call.1}
  #allocation0 [shape = 'u32[]', space=smem, size = 0x4, offset = 0x4, fixed_abs, tag = 'smem constant byte address 0x4 - core index']
  #allocation1 [shape = 'u32[144,128]{1,0:T(1,128)}', space=vmem, size = 0x12000, scoped, tag = 'internal scratch']
  #allocation2 [shape = 'f32[2,4]{1,0:T(2,128)}', space=vmem, size = 0x400, scoped, tag = 'scratch operand']
  %s0 = inlined_call_operand.vmem [shape: f32[4,4], index: 0, kind: input, shape index: {}]
  %s1 = inlined_call_operand.vmem [shape: f32[4,2], index: 1, kind: input, shape index: {}]
  %s2 = inlined_call_operand.hbm [shape: f32[2,2], index: 2, kind: input, shape index: {}]
  %s3 = inlined_call_operand.vmem [shape: f32[4,4], index: 3, kind: input, shape index: {}]
  %s4 = inlined_call_operand.vmem [shape: f32[4,128], index: 4, kind: input, shape index: {}]
  %s5 = inlined_call_operand.hbm [shape: f32[2,128], index: 5, kind: output, shape index: {}]
  %s6 = sld [smem:[#allocation0]]
  $region38: #{tpu_custom_call.1} parent=0
    _
  %s8 = ssub.s32 1, %s6
  %s9 = scalar_select 0, %s8, %s6
  $region1: #{tpu_custom_call.1} parent=0
    #allocation3 [shape = 'u8[1024]{0}', space=vmem, size = 0x400, scoped, tag = 'input window, operand 2, single buffered']
    #allocation4 [shape = 's32[1]{0}', space=sflag, size = 0x4, scoped, tag = 'scoped memory for tpu_custom_call.1']
    #allocation5 [shape = 's32[1]{0}', space=sflag, size = 0x4, scoped, tag = 'scoped memory for tpu_custom_call.1']
    #allocation6 [shape = 'u8[1024]{0}', space=vmem, size = 0x400, scoped, tag = 'output window, operand 0, single buffered']
    %10 = vsyncpa [#allocation4], 0
    %11 = vsyncpa [#allocation5], 0
    // Predicated region
    $region2: #{tpu_custom_call.1} parent=1 // pred_check
      _
    $region3: #{tpu_custom_call.1} parent=1 // pred_check_branch
      %13 = sbr.rel (0) target = $region5
    $region4: #{tpu_custom_call.1} parent=1 // pred_region
      _
    $region5: #{tpu_custom_call.1} parent=1 // pred_fallthru
      _
    // Predicated region
    $region6: #{tpu_custom_call.1} parent=1 // pred_check
      _
    $region7: #{tpu_custom_call.1} parent=1 // pred_check_branch
      %15 = sbr.rel (0) target = $region9
    $region8: #{tpu_custom_call.1} parent=1 // pred_region
      _
    $region9: #{tpu_custom_call.1} parent=1 // pred_fallthru
      _
    // Predicated region
    $region10: #{tpu_custom_call.1} parent=1 // pred_check
      _
    $region11: #{tpu_custom_call.1} parent=1 // pred_check_branch
      %17 = sbr.rel (0) target = $region13
    $region12: #{tpu_custom_call.1} parent=1 // pred_region
      %s19 = ssub.s32 32, 32
      %20 = vsyncadd [#allocation4], %s19
      %s22 = sshll.u32 [#allocation3], 4
      %s23 = int_to_ptr.vmem [resolvable:$true] %s22
      %25 = dma.hbm_to_vmem [thread:$0]  %s2, 32, %s23, [#allocation4]
    $region13: #{tpu_custom_call.1} parent=1 // pred_fallthru
      _
    // Predicated region
    $region14: #{tpu_custom_call.1} parent=1 // pred_check
      _
    $region15: #{tpu_custom_call.1} parent=1 // pred_check_branch
      %27 = sbr.rel (0) target = $region17
    $region16: #{tpu_custom_call.1} parent=1 // pred_region
      _
    $region17: #{tpu_custom_call.1} parent=1 // pred_fallthru
      _
    // Predicated region
    $region18: #{tpu_custom_call.1} parent=1 // pred_check
      _
    $region19: #{tpu_custom_call.1} parent=1 // pred_check_branch
      %29 = sbr.rel (0) target = $region21
    $region20: #{tpu_custom_call.1} parent=1 // pred_region
      _
    $region21: #{tpu_custom_call.1} parent=1 // pred_fallthru
      _
    // Predicated region
    $region22: #{tpu_custom_call.1} parent=1 // pred_check
      _
    $region23: #{tpu_custom_call.1} parent=1 // pred_check_branch
      %31 = sbr.rel (0) target = $region25
    $region24: #{tpu_custom_call.1} parent=1 // pred_region
      %32 = dma.done [#allocation4], 32
    $region25: #{tpu_custom_call.1} parent=1 // pred_fallthru
      _
    %p33 = scmp.eq.s32.totalorder 0, 0
    // Predicated region
    $region26: #{tpu_custom_call.1} parent=1 // pred_check
      %p34 = pneg %p33
    $region27: #{tpu_custom_call.1} parent=1 // pred_check_branch
      %36 = sbr.rel (%p34) target = $region29
    $region28: #{tpu_custom_call.1} parent=1 // pred_region
      %v37 = vld [vmem:[%s0] sm:$0xf]
      %v38 = vld [vmem:[%s1] sm:$0xf]
      %v39 = vld [vmem:[#allocation3] sm:$0x3]
      %v40 = vld [vmem:[%s3] sm:$0xf]
      %41 = vxpose.xlu0.b32.start [1/16] %v40, 128
      %42 = vxpose.xlu0.b32.cont [2/16] 0.0, 128
      %43 = vxpose.xlu0.b32.cont [3/16] 0.0, 128
      %44 = vxpose.xlu0.b32.cont [4/16] 0.0, 128
      %45 = vxpose.xlu0.b32.cont [5/16] 0.0, 128
      %46 = vxpose.xlu0.b32.cont [6/16] 0.0, 128
      %47 = vxpose.xlu0.b32.cont [7/16] 0.0, 128
      %48 = vxpose.xlu0.b32.cont [8/16] 0.0, 128
      %49 = vxpose.xlu0.b32.cont [9/16] 0.0, 128
      %50 = vxpose.xlu0.b32.cont [10/16] 0.0, 128
      %51 = vxpose.xlu0.b32.cont [11/16] 0.0, 128
      %52 = vxpose.xlu0.b32.cont [12/16] 0.0, 128
      %53 = vxpose.xlu0.b32.cont [13/16] 0.0, 128
      %54 = vxpose.xlu0.b32.cont [14/16] 0.0, 128
      %55 = vxpose.xlu0.b32.cont [15/16] 0.0, 128
      %56 = vxpose.xlu0.b32.end [16/16] 0.0, 128
      %v57 = vpop.trf.xlu0
      %v58 = vpop.trf.xlu0
      %v59 = vpop.trf.xlu0
      %v60 = vpop.trf.xlu0
      %v61 = vpop.trf.xlu0
      %v62 = vpop.trf.xlu0
      %v63 = vpop.trf.xlu0
      %v64 = vpop.trf.xlu0
      %v65 = vpop.trf.xlu0
      %v66 = vpop.trf.xlu0
      %v67 = vpop.trf.xlu0
      %v68 = vpop.trf.xlu0
      %v69 = vpop.trf.xlu0
      %v70 = vpop.trf.xlu0
      %v71 = vpop.trf.xlu0
      %v72 = vpop.trf.xlu0
      %vm73 = vcmask 31744
      %v75 = vsel %vm73, %v57, 0
      %vm77 = vcmask 1043456
      %v79 = vsel %vm77, %v40, 0
      %81 = vmatprep.subr.mxu0 0.0
      %82 = vmatpush1.msra.mxu0 0.0
      %83 = vmatprep.subr.mxu0 0.0
      %84 = vmatpush1.msra.mxu0 0.0
      %85 = vmatprep.subr.mxu0 0.0
      %86 = vmatpush1.msra.mxu0 0.0
      %87 = vmatprep.subr.mxu0 0.0
      %88 = vmatpush1.msra.mxu0 0.0
      %89 = vmatprep.subr.mxu0 0.0
      %90 = vmatpush1.msra.mxu0 0.0
      %91 = vmatprep.subr.mxu0 0.0
      %92 = vmatpush1.msra.mxu0 0.0
      %93 = vmatprep.subr.mxu0 0.0
      %94 = vmatpush1.msra.mxu0 0.0
      %95 = vmatprep.subr.mxu0 0.0
      %96 = vmatpush1.msra.mxu0 0.0
      %97 = vmatprep.subr.mxu0 0.0
      %98 = vmatpush1.msra.mxu0 0.0
      %99 = vmatprep.subr.mxu0 0.0
      %100 = vmatpush1.msra.mxu0 0.0
      %101 = vmatprep.subr.mxu0 0.0
      %102 = vmatpush1.msra.mxu0 0.0
      %103 = vmatprep.subr.mxu0 0.0
      %104 = vmatpush1.msra.mxu0 0.0
      %105 = vmatprep.subr.mxu0 0.0
      %106 = vmatpush1.msra.mxu0 0.0
      %107 = vmatprep.subr.mxu0 0.0
      %108 = vmatpush1.msra.mxu0 0.0
      %109 = vmatprep.subr.mxu0 0.0
      %110 = vmatpush1.msra.mxu0 0.0
      %111 = vmatprep.subr.mxu0 0.0
      %112 = vmatpush1.msra.mxu0 %v79
      %113 = vmatprep.subr.mxu0 0.0
      %114 = vmatpush2.msra.mxu0 0.0
      %115 = vmatprep.subr.mxu0 0.0
      %116 = vmatpush2.msra.mxu0 0.0
      %117 = vmatprep.subr.mxu0 0.0
      %118 = vmatpush2.msra.mxu0 0.0
      %119 = vmatprep.subr.mxu0 0.0
      %120 = vmatpush2.msra.mxu0 0.0
      %121 = vmatprep.subr.mxu0 0.0
      %122 = vmatpush2.msra.mxu0 0.0
      %123 = vmatprep.subr.mxu0 0.0
      %124 = vmatpush2.msra.mxu0 0.0
      %125 = vmatprep.subr.mxu0 0.0
      %126 = vmatpush2.msra.mxu0 0.0
      %127 = vmatprep.subr.mxu0 0.0
      %128 = vmatpush2.msra.mxu0 0.0
      %129 = vmatprep.subr.mxu0 0.0
      %130 = vmatpush2.msra.mxu0 0.0
      %131 = vmatprep.subr.mxu0 0.0
      %132 = vmatpush2.msra.mxu0 0.0
      %133 = vmatprep.subr.mxu0 0.0
      %134 = vmatpush2.msra.mxu0 0.0
      %135 = vmatprep.subr.mxu0 0.0
      %136 = vmatpush2.msra.mxu0 0.0
      %137 = vmatprep.subr.mxu0 0.0
      %138 = vmatpush2.msra.mxu0 0.0
      %139 = vmatprep.subr.mxu0 0.0
      %140 = vmatpush2.msra.mxu0 0.0
      %141 = vmatprep.subr.mxu0 0.0
      %142 = vmatpush2.msra.mxu0 0.0
      %143 = vmatprep.subr.mxu0 0.0
      %144 = vmatpush2.msra.mxu0 0.0
      %145 = vmatprep.mubr.f32.mxu0 0.0
      %146 = vmatmul.mubr.f32.gmra.mxu0 %v75
      %v147 = vpop.f32.mrf.mxu0
      %v148 = vadd.f32 0.0, %v147
      %v149 = vpop.f32.mrf.mxu0
      %150 = vdwg.mxu0
      %151 = vxpose.xlu0.b32.start [1/16] %v38, 128
      %152 = vxpose.xlu0.b32.cont [2/16] 0.0, 128
      %153 = vxpose.xlu0.b32.cont [3/16] 0.0, 128
      %154 = vxpose.xlu0.b32.cont [4/16] 0.0, 128
      %155 = vxpose.xlu0.b32.cont [5/16] 0.0, 128
      %156 = vxpose.xlu0.b32.cont [6/16] 0.0, 128
      %157 = vxpose.xlu0.b32.cont [7/16] 0.0, 128
      %158 = vxpose.xlu0.b32.cont [8/16] 0.0, 128
      %159 = vxpose.xlu0.b32.cont [9/16] 0.0, 128
      %160 = vxpose.xlu0.b32.cont [10/16] 0.0, 128
      %161 = vxpose.xlu0.b32.cont [11/16] 0.0, 128
      %162 = vxpose.xlu0.b32.cont [12/16] 0.0, 128
      %163 = vxpose.xlu0.b32.cont [13/16] 0.0, 128
      %164 = vxpose.xlu0.b32.cont [14/16] 0.0, 128
      %165 = vxpose.xlu0.b32.cont [15/16] 0.0, 128
      %166 = vxpose.xlu0.b32.end [16/16] 0.0, 128
      %v167 = vpop.trf.xlu0
      %v168 = vpop.trf.xlu0
      %v169 = vpop.trf.xlu0
      %v170 = vpop.trf.xlu0
      %v171 = vpop.trf.xlu0
      %v172 = vpop.trf.xlu0
      %v173 = vpop.trf.xlu0
      %v174 = vpop.trf.xlu0
      %v175 = vpop.trf.xlu0
      %v176 = vpop.trf.xlu0
      %v177 = vpop.trf.xlu0
      %v178 = vpop.trf.xlu0
      %v179 = vpop.trf.xlu0
      %v180 = vpop.trf.xlu0
      %v181 = vpop.trf.xlu0
      %v182 = vpop.trf.xlu0
      %v184 = vsel %vm73, %v167, 0
      %v187 = vsel %vm77, %v148, 0
      %189 = vmatprep.subr.mxu0 0.0
      %190 = vmatpush1.msra.mxu0 0.0
      %191 = vmatprep.subr.mxu0 0.0
      %192 = vmatpush1.msra.mxu0 0.0
      %193 = vmatprep.subr.mxu0 0.0
      %194 = vmatpush1.msra.mxu0 0.0
      %195 = vmatprep.subr.mxu0 0.0
      %196 = vmatpush1.msra.mxu0 0.0
      %197 = vmatprep.subr.mxu0 0.0
      %198 = vmatpush1.msra.mxu0 0.0
      %199 = vmatprep.subr.mxu0 0.0
      %200 = vmatpush1.msra.mxu0 0.0
      %201 = vmatprep.subr.mxu0 0.0
      %202 = vmatpush1.msra.mxu0 0.0
      %203 = vmatprep.subr.mxu0 0.0
      %204 = vmatpush1.msra.mxu0 0.0
      %205 = vmatprep.subr.mxu0 0.0
      %206 = vmatpush1.msra.mxu0 0.0
      %207 = vmatprep.subr.mxu0 0.0
      %208 = vmatpush1.msra.mxu0 0.0
      %209 = vmatprep.subr.mxu0 0.0
      %210 = vmatpush1.msra.mxu0 0.0
      %211 = vmatprep.subr.mxu0 0.0
      %212 = vmatpush1.msra.mxu0 0.0
      %213 = vmatprep.subr.mxu0 0.0
      %214 = vmatpush1.msra.mxu0 0.0
      %215 = vmatprep.subr.mxu0 0.0
      %216 = vmatpush1.msra.mxu0 0.0
      %217 = vmatprep.subr.mxu0 0.0
      %218 = vmatpush1.msra.mxu0 0.0
      %219 = vmatprep.subr.mxu0 0.0
      %220 = vmatpush1.msra.mxu0 %v187
      %221 = vmatprep.subr.mxu0 0.0
      %222 = vmatpush2.msra.mxu0 0.0
      %223 = vmatprep.subr.mxu0 0.0
      %224 = vmatpush2.msra.mxu0 0.0
      %225 = vmatprep.subr.mxu0 0.0
      %226 = vmatpush2.msra.mxu0 0.0
      %227 = vmatprep.subr.mxu0 0.0
      %228 = vmatpush2.msra.mxu0 0.0
      %229 = vmatprep.subr.mxu0 0.0
      %230 = vmatpush2.msra.mxu0 0.0
      %231 = vmatprep.subr.mxu0 0.0
      %232 = vmatpush2.msra.mxu0 0.0
      %233 = vmatprep.subr.mxu0 0.0
      %234 = vmatpush2.msra.mxu0 0.0
      %235 = vmatprep.subr.mxu0 0.0
      %236 = vmatpush2.msra.mxu0 0.0
      %237 = vmatprep.subr.mxu0 0.0
      %238 = vmatpush2.msra.mxu0 0.0
      %239 = vmatprep.subr.mxu0 0.0
      %240 = vmatpush2.msra.mxu0 0.0
      %241 = vmatprep.subr.mxu0 0.0
      %242 = vmatpush2.msra.mxu0 0.0
      %243 = vmatprep.subr.mxu0 0.0
      %244 = vmatpush2.msra.mxu0 0.0
      %245 = vmatprep.subr.mxu0 0.0
      %246 = vmatpush2.msra.mxu0 0.0
      %247 = vmatprep.subr.mxu0 0.0
      %248 = vmatpush2.msra.mxu0 0.0
      %249 = vmatprep.subr.mxu0 0.0
      %250 = vmatpush2.msra.mxu0 0.0
      %251 = vmatprep.subr.mxu0 0.0
      %252 = vmatpush2.msra.mxu0 0.0
      %253 = vmatprep.mubr.f32.mxu0 0.0
      %254 = vmatmul.mubr.f32.gmra.mxu0 %v184
      %v255 = vpop.f32.mrf.mxu0
      %v256 = vadd.f32 0.0, %v255
      %v257 = vpop.f32.mrf.mxu0
      %258 = vdwg.mxu0
      %v260 = vsel %vm73, %v256, 0
      %v263 = vsel %vm77, %v38, 0
      %265 = vmatprep.subr.mxu0 0.0
      %266 = vmatpush1.msra.mxu0 0.0
      %267 = vmatprep.subr.mxu0 0.0
      %268 = vmatpush1.msra.mxu0 0.0
      %269 = vmatprep.subr.mxu0 0.0
      %270 = vmatpush1.msra.mxu0 0.0
      %271 = vmatprep.subr.mxu0 0.0
      %272 = vmatpush1.msra.mxu0 0.0
      %273 = vmatprep.subr.mxu0 0.0
      %274 = vmatpush1.msra.mxu0 0.0
      %275 = vmatprep.subr.mxu0 0.0
      %276 = vmatpush1.msra.mxu0 0.0
      %277 = vmatprep.subr.mxu0 0.0
      %278 = vmatpush1.msra.mxu0 0.0
      %279 = vmatprep.subr.mxu0 0.0
      %280 = vmatpush1.msra.mxu0 0.0
      %281 = vmatprep.subr.mxu0 0.0
      %282 = vmatpush1.msra.mxu0 0.0
      %283 = vmatprep.subr.mxu0 0.0
      %284 = vmatpush1.msra.mxu0 0.0
      %285 = vmatprep.subr.mxu0 0.0
      %286 = vmatpush1.msra.mxu0 0.0
      %287 = vmatprep.subr.mxu0 0.0
      %288 = vmatpush1.msra.mxu0 0.0
      %289 = vmatprep.subr.mxu0 0.0
      %290 = vmatpush1.msra.mxu0 0.0
      %291 = vmatprep.subr.mxu0 0.0
      %292 = vmatpush1.msra.mxu0 0.0
      %293 = vmatprep.subr.mxu0 0.0
      %294 = vmatpush1.msra.mxu0 0.0
      %295 = vmatprep.subr.mxu0 0.0
      %296 = vmatpush1.msra.mxu0 %v263
      %297 = vmatprep.subr.mxu0 0.0
      %298 = vmatpush2.msra.mxu0 0.0
      %299 = vmatprep.subr.mxu0 0.0
      %300 = vmatpush2.msra.mxu0 0.0
      %301 = vmatprep.subr.mxu0 0.0
      %302 = vmatpush2.msra.mxu0 0.0
      %303 = vmatprep.subr.mxu0 0.0
      %304 = vmatpush2.msra.mxu0 0.0
      %305 = vmatprep.subr.mxu0 0.0
      %306 = vmatpush2.msra.mxu0 0.0
      %307 = vmatprep.subr.mxu0 0.0
      %308 = vmatpush2.msra.mxu0 0.0
      %309 = vmatprep.subr.mxu0 0.0
      %310 = vmatpush2.msra.mxu0 0.0
      %311 = vmatprep.subr.mxu0 0.0
      %312 = vmatpush2.msra.mxu0 0.0
      %313 = vmatprep.subr.mxu0 0.0
      %314 = vmatpush2.msra.mxu0 0.0
      %315 = vmatprep.subr.mxu0 0.0
      %316 = vmatpush2.msra.mxu0 0.0
      %317 = vmatprep.subr.mxu0 0.0
      %318 = vmatpush2.msra.mxu0 0.0
      %319 = vmatprep.subr.mxu0 0.0
      %320 = vmatpush2.msra.mxu0 0.0
      %321 = vmatprep.subr.mxu0 0.0
      %322 = vmatpush2.msra.mxu0 0.0
      %323 = vmatprep.subr.mxu0 0.0
      %324 = vmatpush2.msra.mxu0 0.0
      %325 = vmatprep.subr.mxu0 0.0
      %326 = vmatpush2.msra.mxu0 0.0
      %327 = vmatprep.subr.mxu0 0.0
      %328 = vmatpush2.msra.mxu0 0.0
      %329 = vmatprep.mubr.f32.mxu0 0.0
      %330 = vmatmul.mubr.f32.gmra.mxu0 %v260
      %v331 = vpop.f32.mrf.mxu0
      %v332 = vadd.f32 0.0, %v331
      %v333 = vpop.f32.mrf.mxu0
      %334 = vdwg.mxu0
      %v335 = vadd.f32 %v39, %v332
      %v337 = vsel %vm77, %v37, 0
      %339 = vmatprep.subr.mxu0 0.0
      %340 = vmatpush1.msra.mxu0 0.0
      %341 = vmatprep.subr.mxu0 0.0
      %342 = vmatpush1.msra.mxu0 0.0
      %343 = vmatprep.subr.mxu0 0.0
      %344 = vmatpush1.msra.mxu0 0.0
      %345 = vmatprep.subr.mxu0 0.0
      %346 = vmatpush1.msra.mxu0 0.0
      %347 = vmatprep.subr.mxu0 0.0
      %348 = vmatpush1.msra.mxu0 0.0
      %349 = vmatprep.subr.mxu0 0.0
      %350 = vmatpush1.msra.mxu0 0.0
      %351 = vmatprep.subr.mxu0 0.0
      %352 = vmatpush1.msra.mxu0 0.0
      %353 = vmatprep.subr.mxu0 0.0
      %354 = vmatpush1.msra.mxu0 0.0
      %355 = vmatprep.subr.mxu0 0.0
      %356 = vmatpush1.msra.mxu0 0.0
      %357 = vmatprep.subr.mxu0 0.0
      %358 = vmatpush1.msra.mxu0 0.0
      %359 = vmatprep.subr.mxu0 0.0
      %360 = vmatpush1.msra.mxu0 0.0
      %361 = vmatprep.subr.mxu0 0.0
      %362 = vmatpush1.msra.mxu0 0.0
      %363 = vmatprep.subr.mxu0 0.0
      %364 = vmatpush1.msra.mxu0 0.0
      %365 = vmatprep.subr.mxu0 0.0
      %366 = vmatpush1.msra.mxu0 0.0
      %367 = vmatprep.subr.mxu0 0.0
      %368 = vmatpush1.msra.mxu0 0.0
      %369 = vmatprep.subr.mxu0 0.0
      %370 = vmatpush1.msra.mxu0 %v337
      %371 = vmatprep.subr.mxu0 0.0
      %372 = vmatpush2.msra.mxu0 0.0
      %373 = vmatprep.subr.mxu0 0.0
      %374 = vmatpush2.msra.mxu0 0.0
      %375 = vmatprep.subr.mxu0 0.0
      %376 = vmatpush2.msra.mxu0 0.0
      %377 = vmatprep.subr.mxu0 0.0
      %378 = vmatpush2.msra.mxu0 0.0
      %379 = vmatprep.subr.mxu0 0.0
      %380 = vmatpush2.msra.mxu0 0.0
      %381 = vmatprep.subr.mxu0 0.0
      %382 = vmatpush2.msra.mxu0 0.0
      %383 = vmatprep.subr.mxu0 0.0
      %384 = vmatpush2.msra.mxu0 0.0
      %385 = vmatprep.subr.mxu0 0.0
      %386 = vmatpush2.msra.mxu0 0.0
      %387 = vmatprep.subr.mxu0 0.0
      %388 = vmatpush2.msra.mxu0 0.0
      %389 = vmatprep.subr.mxu0 0.0
      %390 = vmatpush2.msra.mxu0 0.0
      %391 = vmatprep.subr.mxu0 0.0
      %392 = vmatpush2.msra.mxu0 0.0
      %393 = vmatprep.subr.mxu0 0.0
      %394 = vmatpush2.msra.mxu0 0.0
      %395 = vmatprep.subr.mxu0 0.0
      %396 = vmatpush2.msra.mxu0 0.0
      %397 = vmatprep.subr.mxu0 0.0
      %398 = vmatpush2.msra.mxu0 0.0
      %399 = vmatprep.subr.mxu0 0.0
      %400 = vmatpush2.msra.mxu0 0.0
      %401 = vmatprep.subr.mxu0 0.0
      %402 = vmatpush2.msra.mxu0 0.0
      %403 = vmatprep.mubr.f32.mxu0 0.0
      %404 = vmatmul.mubr.f32.gmra.mxu0 %v260
      %v405 = vpop.f32.mrf.mxu0
      %v406 = vadd.f32 0.0, %v405
      %v407 = vpop.f32.mrf.mxu0
      %408 = vdwg.mxu0
      %v410 = vrot.slane %v335, 1
      %411 = vrot.lane.b32.xlu0 %v410, 127
      %v412 = vpop.permute.xlu0 %411
      %v414 = vmul.f32 %v335, %v412
      %415 = vrot.lane.b32.xlu0 %v410, 1
      %v416 = vpop.permute.xlu0 %415
      %v418 = vmul.f32 %v335, %v416
      %420 = vrot.lane.b32.xlu0 %v418, 127
      %v421 = vpop.permute.xlu0 %420
      %v423 = vsub.f32 %v414, %v421
      %v424 = vrcp.pop %v423
      %v425 = vmul.f32 1.0, %v424
      %426 = vset.pattern.permute.xlu0 1
      %427 = vperm.xlu0 %426, %v335
      %v428 = vpop.permute.xlu0 %427
      %v431 = vrot.slane %v406, 1
      %v433 = vmul.f32 %v428, %v431
      %v434 = vrot.slane %v406, 7
      %v436 = vmul.f32 %v428, %v434
      %v438 = vrot.slane %v436, 1
      %v440 = vsub.f32 %v433, %v438
      %442 = vset.pattern.permute.xlu0 0
      %443 = vperm.xlu0 %442, %v425
      %v444 = vpop.permute.xlu0 %443
      %v446 = vmul.f32 %v440, %v444
      %447 = vset.pattern.permute.xlu0 0
      %448 = vperm.xlu0 %447, %v335
      %v449 = vpop.permute.xlu0 %448
      %v451 = vmul.f32 %v449, %v434
      %v452 = vmul.f32 %v449, %v431
      %v454 = vrot.slane %v452, 7
      %v456 = vsub.f32 %v451, %v454
      %v457 = vrot.slane %v444, 7
      %v459 = vmul.f32 %v456, %v457
      %vm460 = vcmask 1040384
      %v461 = vsel %vm460, %v446, %v459
      %vm462 = vcmask 25600
      %463 = vst.msk [vmem:[#allocation2] sm:$0x3] %vm462, %v461
    $region29: #{tpu_custom_call.1} parent=1 // pred_fallthru
      _
    %v464 = vld [vmem:[#allocation2] sm:$0x3]
    %v465 = vld [vmem:[%s4] sm:$0xf]
    %vm466 = vcmask 31744
    %v468 = vsel %vm466, %v464, 0
    %vm470 = vcmask 1043456
    %v472 = vsel %vm470, %v465, 0
    %474 = vmatprep.subr.mxu0 0.0
    %475 = vmatpush1.msra.mxu0 0.0
    %476 = vmatprep.subr.mxu0 0.0
    %477 = vmatpush1.msra.mxu0 0.0
    %478 = vmatprep.subr.mxu0 0.0
    %479 = vmatpush1.msra.mxu0 0.0
    %480 = vmatprep.subr.mxu0 0.0
    %481 = vmatpush1.msra.mxu0 0.0
    %482 = vmatprep.subr.mxu0 0.0
    %483 = vmatpush1.msra.mxu0 0.0
    %484 = vmatprep.subr.mxu0 0.0
    %485 = vmatpush1.msra.mxu0 0.0
    %486 = vmatprep.subr.mxu0 0.0
    %487 = vmatpush1.msra.mxu0 0.0
    %488 = vmatprep.subr.mxu0 0.0
    %489 = vmatpush1.msra.mxu0 0.0
    %490 = vmatprep.subr.mxu0 0.0
    %491 = vmatpush1.msra.mxu0 0.0
    %492 = vmatprep.subr.mxu0 0.0
    %493 = vmatpush1.msra.mxu0 0.0
    %494 = vmatprep.subr.mxu0 0.0
    %495 = vmatpush1.msra.mxu0 0.0
    %496 = vmatprep.subr.mxu0 0.0
    %497 = vmatpush1.msra.mxu0 0.0
    %498 = vmatprep.subr.mxu0 0.0
    %499 = vmatpush1.msra.mxu0 0.0
    %500 = vmatprep.subr.mxu0 0.0
    %501 = vmatpush1.msra.mxu0 0.0
    %502 = vmatprep.subr.mxu0 0.0
    %503 = vmatpush1.msra.mxu0 0.0
    %504 = vmatprep.subr.mxu0 0.0
    %505 = vmatpush1.msra.mxu0 %v472
    %506 = vmatprep.subr.mxu0 0.0
    %507 = vmatpush2.msra.mxu0 0.0
    %508 = vmatprep.subr.mxu0 0.0
    %509 = vmatpush2.msra.mxu0 0.0
    %510 = vmatprep.subr.mxu0 0.0
    %511 = vmatpush2.msra.mxu0 0.0
    %512 = vmatprep.subr.mxu0 0.0
    %513 = vmatpush2.msra.mxu0 0.0
    %514 = vmatprep.subr.mxu0 0.0
    %515 = vmatpush2.msra.mxu0 0.0
    %516 = vmatprep.subr.mxu0 0.0
    %517 = vmatpush2.msra.mxu0 0.0
    %518 = vmatprep.subr.mxu0 0.0
    %519 = vmatpush2.msra.mxu0 0.0
    %520 = vmatprep.subr.mxu0 0.0
    %521 = vmatpush2.msra.mxu0 0.0
    %522 = vmatprep.subr.mxu0 0.0
    %523 = vmatpush2.msra.mxu0 0.0
    %524 = vmatprep.subr.mxu0 0.0
    %525 = vmatpush2.msra.mxu0 0.0
    %526 = vmatprep.subr.mxu0 0.0
    %527 = vmatpush2.msra.mxu0 0.0
    %528 = vmatprep.subr.mxu0 0.0
    %529 = vmatpush2.msra.mxu0 0.0
    %530 = vmatprep.subr.mxu0 0.0
    %531 = vmatpush2.msra.mxu0 0.0
    %532 = vmatprep.subr.mxu0 0.0
    %533 = vmatpush2.msra.mxu0 0.0
    %534 = vmatprep.subr.mxu0 0.0
    %535 = vmatpush2.msra.mxu0 0.0
    %536 = vmatprep.subr.mxu0 0.0
    %537 = vmatpush2.msra.mxu0 0.0
    %538 = vmatprep.mubr.f32.mxu0 0.0
    %539 = vmatmul.mubr.f32.gmra.mxu0 %v468
    %v540 = vpop.f32.mrf.mxu0
    %v541 = vadd.f32 0.0, %v540
    %v542 = vpop.f32.mrf.mxu0
    %543 = vdwg.mxu0
    %544 = vst [vmem:[#allocation6] sm:$0x3] %v541
    // Predicated region
    $region30: #{tpu_custom_call.1} parent=1 // pred_check
      _
    $region31: #{tpu_custom_call.1} parent=1 // pred_check_branch
      %546 = sbr.rel (0) target = $region33
    $region32: #{tpu_custom_call.1} parent=1 // pred_region
      %s548 = ssub.s32 32, 32
      %549 = vsyncadd [#allocation5], %s548
      %s551 = sshll.u32 [#allocation6], 4
      %s552 = int_to_ptr.vmem [resolvable:$true] %s551
      %554 = dma.vmem_to_hbm [thread:$0]  %s552, 32, %s5, [#allocation5]
    $region33: #{tpu_custom_call.1} parent=1 // pred_fallthru
      _
    // Predicated region
    $region34: #{tpu_custom_call.1} parent=1 // pred_check
      _
    $region35: #{tpu_custom_call.1} parent=1 // pred_check_branch
      %556 = sbr.rel (0) target = $region37
    $region36: #{tpu_custom_call.1} parent=1 // pred_region
      %557 = dma.done [#allocation5], 32
    $region37: #{tpu_custom_call.1} parent=1 // pred_fallthru
      _
    %558 = vsyncpa [#allocation4], 1
    %559 = vsyncpa [#allocation5], 1

</llo_original>
